<compile_context>
chip_gen: v7x
topology: tpu7x:2x2x1
jax: 0.10.0
libtpu: 0.0.40
codegen_flags: <defaults>
</compile_context>

<pallas_src>
import functools

import jax
import jax.numpy as jnp
from jax.experimental import pallas as pl
from jax.experimental.pallas import tpu as pltpu


# -----------------------------------------------------------------------------
# small helpers (static, Python-level)
# -----------------------------------------------------------------------------

def _round_up(x, m):
    return (x + m - 1) // m * m


def _sublane_multiple(dtype):
    return {4: 8, 2: 16, 1: 32}.get(jnp.dtype(dtype).itemsize, 8)


def _block_bytes(block_shape, dtype):
    """VMEM bytes of ONE buffer of this block, with (sublane, lane) padding."""
    itemsize = jnp.dtype(dtype).itemsize
    dims = list(block_shape)
    dims[-1] = _round_up(dims[-1], 128)
    if len(dims) >= 2:
        dims[-2] = _round_up(dims[-2], _sublane_multiple(dtype))
    n = itemsize
    for d in dims:
        n *= d
    return n


_MIB = 1024 * 1024
_DEFAULT_VMEM = 64 * _MIB            # conservative fallback (v7x physical)


def _tpu_vmem_bytes():
    """Physical VMEM capacity; falls back to the smallest (v7x) if unknown."""
    try:
        return int(pltpu.get_tpu_info().vmem_capacity_bytes)
    except Exception:
        return _DEFAULT_VMEM


def _derive_budgets():
    """Generation-aware VMEM sizing.

    Returns (fused_budget, vmem_cap, tile_target_bytes).
      v7x  (64 MiB):  ~44 MiB fused budget, ~50 MiB cap, 4 MiB tiles.
      v5e/v6e (128 MiB): ~96 MiB fused budget, ~114 MiB cap, 6 MiB tiles.
    """
    vmem = _tpu_vmem_bytes()
    fused_budget = max(32 * _MIB, min(int(0.75 * vmem), vmem - 20 * _MIB))
    vmem_cap = max(32 * _MIB, vmem - 14 * _MIB)
    tile_target = 4 * _MIB if vmem <= 64 * _MIB else 6 * _MIB
    return fused_budget, vmem_cap, tile_target


def _vmem_limit(footprint_bytes, cap_bytes):
    return int(min(max(footprint_bytes + 4 * _MIB, 16 * _MIB), cap_bytes))


# -----------------------------------------------------------------------------
# kernels
# -----------------------------------------------------------------------------

def _unpack_params(params_ref):
    """params block (1, C, 3) -> f32 alpha/gamma/beta, each (1, C, 1)."""
    p = params_ref[...].astype(jnp.float32)
    return p[:, :, 0:1], p[:, :, 1:2], p[:, :, 2:3]


def _gct_fused_kernel(params_ref, x_ref, o_ref, *, epsilon, mode, after_relu):
    """Whole-sample kernel.  x block: (1, C, HW); params: (1, C, 3)."""
    alpha, gamma, beta = _unpack_params(params_ref)
    xf = x_ref[...].astype(jnp.float32)                  # stats in f32

    if mode == "l2":
        ssq = jnp.sum(xf * xf, axis=-1, keepdims=True)                     # (1, C, 1)
        embedding = jnp.sqrt(ssq + epsilon) * alpha
        mean_sq = jnp.mean(embedding * embedding, axis=1, keepdims=True)   # (1, 1, 1)
        norm = gamma * jax.lax.rsqrt(mean_sq + epsilon)    # EUP; == gamma/sqrt(.)
    else:  # "l1"
        xr = xf if after_relu else jnp.abs(xf)
        embedding = jnp.sum(xr, axis=-1, keepdims=True) * alpha
        mean_abs = jnp.mean(jnp.abs(embedding), axis=1, keepdims=True)
        norm = gamma / (mean_abs + epsilon)

    gate = 1.0 + jnp.tanh(embedding * norm + beta)                         # (1, C, 1)
    # Gating multiply in the native input dtype; gate broadcasts over lanes.
    o_ref[...] = x_ref[...] * gate.astype(o_ref.dtype)


def _gct_stats_kernel(params_ref, x_ref, gate_ref, acc_ref, *,
                      epsilon, mode, after_relu, hw, hw_tile):
    """Pass 1 (tiled): accumulate per-channel stats over HW tiles, then
    compute the (1, C, 1) gate on the last tile."""
    t = pl.program_id(1)
    last = pl.num_programs(1) - 1

    @pl.when(t == 0)
    def _():
        acc_ref[...] = jnp.zeros_like(acc_ref)

    def _partial(xf):
        if mode == "l2":
            return jnp.sum(xf * xf, axis=-1, keepdims=True)
        xr = xf if after_relu else jnp.abs(xf)
        return jnp.sum(xr, axis=-1, keepdims=True)

    if hw % hw_tile != 0:
        # Only the last tile is ragged: pay the iota/compare/select mask there
        # only, so all other tiles stay pure (DMA-bound, no extra VALU work).
        @pl.when(t != last)
        def _():
            acc_ref[...] += _partial(x_ref[...].astype(jnp.float32))

        @pl.when(t == last)
        def _():
            xf = x_ref[...].astype(jnp.float32)
            lane = jax.lax.broadcasted_iota(jnp.int32, xf.shape, 2)
            xf = jnp.where(t * hw_tile + lane < hw, xf, 0.0)
            acc_ref[...] += _partial(xf)
    else:
        acc_ref[...] += _partial(x_ref[...].astype(jnp.float32))

    @pl.when(t == last)
    def _():
        alpha, gamma, beta = _unpack_params(params_ref)
        if mode == "l2":
            embedding = jnp.sqrt(acc_ref[...] + epsilon) * alpha
            mean_sq = jnp.mean(embedding * embedding, axis=1, keepdims=True)
            norm = gamma * jax.lax.rsqrt(mean_sq + epsilon)
        else:
            embedding = acc_ref[...] * alpha
            mean_abs = jnp.mean(jnp.abs(embedding), axis=1, keepdims=True)
            norm = gamma / (mean_abs + epsilon)
        gate_ref[...] = 1.0 + jnp.tanh(embedding * norm + beta)


def _gct_apply_kernel(gate_ref, x_ref, o_ref):
    """Pass 2 (tiled): apply the per-channel gate; multiply in native dtype."""
    o_ref[...] = x_ref[...] * gate_ref[...].astype(o_ref.dtype)


# -----------------------------------------------------------------------------
# wrapper
# -----------------------------------------------------------------------------

def gct_forward(x, alpha, gamma, beta, *, epsilon=1e-5, mode="l2",
                after_relu=False, force_tiled=False, tile_hint=None,
                donate_x=False):
    """GCT forward.  x: (N, C, H, W).  alpha/gamma/beta: (1, C, 1, 1)."""
    if mode not in ("l2", "l1"):
        raise ValueError("Unknown mode: %s" % mode)

    n, c, h, w = x.shape
    hw = h * w
    x3 = x.reshape(n, c, hw)

    # Pack the three per-channel params into one (1, C, 3) array: a single
    # constant-index BlockSpec / DMA, and one lane-padded VMEM buffer instead
    # of three.  Channels stay on sublanes so the gate math and the gate
    # broadcast onto x need no lane<->sublane relayout.
    params = jnp.concatenate(
        [alpha.reshape(1, c, 1), gamma.reshape(1, c, 1), beta.reshape(1, c, 1)],
        axis=-1)                                                  # (1, C, 3)
    param_spec = pl.BlockSpec((1, c, 3), lambda *_: (0, 0, 0))
    param_bytes = 2 * _block_bytes((1, c, 3), params.dtype)       # double-buffered

    fused_budget, vmem_cap, tile_target = _derive_budgets()

    x_block_bytes = _block_bytes((1, c, hw), x.dtype)
    fused_footprint = 2 * 2 * x_block_bytes + param_bytes         # 2 bufs x (in+out)

    if (not force_tiled) and fused_footprint <= fused_budget:
        # ---------------- fused whole-sample path ----------------
        kernel = functools.partial(_gct_fused_kernel, epsilon=epsilon,
                                   mode=mode, after_relu=after_relu)
        out = pl.pallas_call(
            kernel,
            out_shape=jax.ShapeDtypeStruct((n, c, hw), x.dtype),
            grid_spec=pltpu.PrefetchScalarGridSpec(
                num_scalar_prefetch=0,
                grid=(n,),
                in_specs=[
                    param_spec,                                      # packed params
                    pl.BlockSpec((1, c, hw), lambda b: (b, 0, 0)),   # x
                ],
                out_specs=pl.BlockSpec((1, c, hw), lambda b: (b, 0, 0)),
            ),
            compiler_params=pltpu.CompilerParams(
                dimension_semantics=("parallel",),
                vmem_limit_bytes=_vmem_limit(fused_footprint, vmem_cap)),
            input_output_aliases=({1: 0} if donate_x else {}),
        )(params, x3)
        return out.reshape(n, c, h, w)

    # ---------------- two-pass tiled path (large feature maps) ----------------
    itemsize = jnp.dtype(x.dtype).itemsize
    c_pad = _round_up(c, _sublane_multiple(x.dtype))
    if tile_hint is not None:
        hw_tile = _round_up(int(tile_hint), 128)
    else:
        hw_tile = max(128, (tile_target // (c_pad * itemsize)) // 128 * 128)
    if hw_tile >= hw:
        hw_tile = hw                      # full-dim block (always legal)
    num_tiles = pl.cdiv(hw, hw_tile)

    tile_block_bytes = _block_bytes((1, c, hw_tile), x.dtype)
    gate_block_bytes = _block_bytes((1, c, 1), jnp.float32)

    # ---- pass 1: per-channel stats + gate ----
    stats_footprint = (2 * tile_block_bytes           # x tiles, double-buffered
                       + 2 * gate_block_bytes         # gate output
                       + gate_block_bytes             # accumulator scratch
                       + param_bytes)
    stats_kernel = functools.partial(
        _gct_stats_kernel, epsilon=epsilon, mode=mode,
        after_relu=after_relu, hw=hw, hw_tile=hw_tile)
    gate = pl.pallas_call(
        stats_kernel,
        out_shape=jax.ShapeDtypeStruct((n, c, 1), jnp.float32),
        grid_spec=pltpu.PrefetchScalarGridSpec(
            num_scalar_prefetch=0,
            grid=(n, num_tiles),
            in_specs=[
                param_spec,                                             # packed params
                pl.BlockSpec((1, c, hw_tile), lambda b, t: (b, 0, t)),  # x
            ],
            out_specs=pl.BlockSpec((1, c, 1), lambda b, t: (b, 0, 0)),
            scratch_shapes=[pltpu.VMEM((1, c, 1), jnp.float32)],
        ),
        compiler_params=pltpu.CompilerParams(
            dimension_semantics=("parallel", "arbitrary"),
            vmem_limit_bytes=_vmem_limit(stats_footprint, vmem_cap)),
    )(params, x3)

    # ---- pass 2: apply the gate ----
    apply_footprint = 2 * 2 * tile_block_bytes + 2 * gate_block_bytes
    out = pl.pallas_call(
        _gct_apply_kernel,
        out_shape=jax.ShapeDtypeStruct((n, c, hw), x.dtype),
        grid_spec=pltpu.PrefetchScalarGridSpec(
            num_scalar_prefetch=0,
            grid=(n, num_tiles),
            in_specs=[
                pl.BlockSpec((1, c, 1), lambda b, t: (b, 0, 0)),        # gate
                pl.BlockSpec((1, c, hw_tile), lambda b, t: (b, 0, t)),  # x
            ],
            out_specs=pl.BlockSpec((1, c, hw_tile), lambda b, t: (b, 0, t)),
        ),
        compiler_params=pltpu.CompilerParams(
            dimension_semantics=("parallel", "parallel"),
            vmem_limit_bytes=_vmem_limit(apply_footprint, vmem_cap)),
        input_output_aliases=({1: 0} if donate_x else {}),
    )(gate, x3)
    return out.reshape(n, c, h, w)


# -----------------------------------------------------------------------------
# pure-JAX reference (mirrors the PyTorch forward exactly)
# -----------------------------------------------------------------------------

def gct_reference(x, alpha, gamma, beta, *, epsilon=1e-5, mode="l2",
                  after_relu=False):
    if mode == "l2":
        embedding = jnp.sqrt(jnp.sum(x ** 2, axis=(2, 3), keepdims=True)
                             + epsilon) * alpha
        norm = gamma / jnp.sqrt(jnp.mean(embedding ** 2, axis=1, keepdims=True)
                                + epsilon)
    else:  # l1
        _x = x if after_relu else jnp.abs(x)
        embedding = jnp.sum(_x, axis=(2, 3), keepdims=True) * alpha
        norm = gamma / (jnp.mean(jnp.abs(embedding), axis=1, keepdims=True)
                        + epsilon)
    gate = 1.0 + jnp.tanh(embedding * norm + beta)
    return x * gate


if __name__ == "__main__":
    key = jax.random.PRNGKey(0)
    kx, kg, kb = jax.random.split(key, 3)

    N, C, H, W = 2, 4, 16, 16
    x = jax.random.normal(kx, (N, C, H, W), dtype=jnp.float32)

    # Parameter shapes per module __init__: (1, C, 1, 1).  gamma/beta get
    # small nonzero values so the gate is nontrivial (torch-default zeros
    # would make the op an identity).
    alpha = jnp.ones((1, C, 1, 1), dtype=jnp.float32)
    gamma = 0.1 * jax.random.normal(kg, (1, C, 1, 1), dtype=jnp.float32)
    beta = 0.1 * jax.random.normal(kb, (1, C, 1, 1), dtype=jnp.float32)

    # --- fused whole-sample path, l2 ---
    out = jax.block_until_ready(
        gct_forward(x, alpha, gamma, beta, epsilon=1e-5, mode="l2"))
    ref = gct_reference(x, alpha, gamma, beta, epsilon=1e-5, mode="l2")
    assert out.shape == (N, C, H, W)
    assert jnp.allclose(out, ref, atol=1e-5, rtol=1e-5), "l2 mismatch"

    # --- fused path, l1 ---
    out_l1 = jax.block_until_ready(
        gct_forward(x, alpha, gamma, beta, mode="l1", after_relu=False))
    ref_l1 = gct_reference(x, alpha, gamma, beta, mode="l1", after_relu=False)
    assert jnp.allclose(out_l1, ref_l1, atol=1e-5, rtol=1e-5), "l1 mismatch"

    # --- fused path with HW not a multiple of 128 (padded-lane masking) ---
    Hr, Wr = 14, 13                      # HW = 182
    xr = jax.random.normal(kx, (N, C, Hr, Wr), dtype=jnp.float32)
    out_r = jax.block_until_ready(gct_forward(xr, alpha, gamma, beta))
    ref_r = gct_reference(xr, alpha, gamma, beta)
    assert jnp.allclose(out_r, ref_r, atol=1e-5, rtol=1e-5), "fused ragged mismatch"

    # --- forced tiled two-pass path, including a ragged (masked) HW tile ---
    H2, W2 = 16, 13                      # HW = 208, tile = 128 -> 2 tiles
    x2 = jax.random.normal(kx, (N, C, H2, W2), dtype=jnp.float32)
    out_t = jax.block_until_ready(
        gct_forward(x2, alpha, gamma, beta, force_tiled=True, tile_hint=128))
    ref_t = gct_reference(x2, alpha, gamma, beta)
    assert jnp.allclose(out_t, ref_t, atol=1e-5, rtol=1e-5), "tiled mismatch"

    out_t1 = jax.block_until_ready(
        gct_forward(x2, alpha, gamma, beta, mode="l1",
                    force_tiled=True, tile_hint=128))
    ref_t1 = gct_reference(x2, alpha, gamma, beta, mode="l1")
    assert jnp.allclose(out_t1, ref_t1, atol=1e-5, rtol=1e-5), "tiled l1 mismatch"

    # --- tiled path without tile_hint (generation-aware tile sizing) ---
    out_t2 = jax.block_until_ready(
        gct_forward(x2, alpha, gamma, beta, force_tiled=True))
    assert jnp.allclose(out_t2, ref_t, atol=1e-5, rtol=1e-5), "tiled auto mismatch"

    print("KERNEL_OK")
</pallas_src>

<mosaic_0001>
module attributes {stable_mosaic.version = 11 : i64} {
  func.func @_gct_fused_kernel(%arg0: i32, %arg1: memref<1x4x3xf32, #tpu.memory_space<vmem>>, %arg2: memref<1x4x256xf32, #tpu.memory_space<vmem>>, %arg3: memref<1x4x256xf32, #tpu.memory_space<vmem>>) attributes {dimension_semantics = [#tpu.dimension_semantics<parallel>], iteration_bounds = array<i64: 2>, scalar_prefetch = 0 : i64, scratch_operands = 0 : i64, tpu.core_type = #tpu.core_type<tc>, window_params = [{pipeline_mode = #tpu.pipeline_mode<synchronous>, transform_indices = @transform_0, window_bounds = array<i64: 1, 4, 3>}, {transform_indices = @transform_1, window_bounds = array<i64: 1, 4, 256>}, {transform_indices = @transform_2, window_bounds = array<i64: 1, 4, 256>}]} {
    %c0 = arith.constant 0 : index
    %c0_0 = arith.constant 0 : index
    %c0_1 = arith.constant 0 : index
    %0 = vector.load %arg1[%c0, %c0_0, %c0_1] : memref<1x4x3xf32, #tpu.memory_space<vmem>>, vector<1x4x3xf32>
    %1 = vector.extract_strided_slice %0 {offsets = [0, 0, 0], sizes = [1, 4, 1], strides = [1, 1, 1]} : vector<1x4x3xf32> to vector<1x4x1xf32>
    %2 = vector.extract_strided_slice %0 {offsets = [0, 0, 1], sizes = [1, 4, 1], strides = [1, 1, 1]} : vector<1x4x3xf32> to vector<1x4x1xf32>
    %3 = vector.extract_strided_slice %0 {offsets = [0, 0, 2], sizes = [1, 4, 1], strides = [1, 1, 1]} : vector<1x4x3xf32> to vector<1x4x1xf32>
    %c0_2 = arith.constant 0 : index
    %c0_3 = arith.constant 0 : index
    %c0_4 = arith.constant 0 : index
    %4 = vector.load %arg2[%c0_2, %c0_3, %c0_4] : memref<1x4x256xf32, #tpu.memory_space<vmem>>, vector<1x4x256xf32>
    %5 = arith.mulf %4, %4 : vector<1x4x256xf32>
    %cst = arith.constant dense<0.000000e+00> : vector<1x4xf32>
    %6 = vector.multi_reduction <add>, %5, %cst [2] : vector<1x4x256xf32> to vector<1x4xf32>
    %7 = vector.shape_cast %6 : vector<1x4xf32> to vector<1x4x1xf32>
    %cst_5 = arith.constant 9.99999974E-6 : f32
    %8 = vector.broadcast %cst_5 : f32 to vector<1x4x1xf32>
    %9 = arith.addf %7, %8 : vector<1x4x1xf32>
    %10 = math.sqrt %9 : vector<1x4x1xf32>
    %11 = arith.mulf %10, %1 : vector<1x4x1xf32>
    %12 = arith.mulf %11, %11 : vector<1x4x1xf32>
    %cst_6 = arith.constant dense<0.000000e+00> : vector<1x1xf32>
    %13 = vector.multi_reduction <add>, %12, %cst_6 [1] : vector<1x4x1xf32> to vector<1x1xf32>
    %14 = vector.shape_cast %13 : vector<1x1xf32> to vector<1x1x1xf32>
    %cst_7 = arith.constant 4.000000e+00 : f32
    %15 = vector.broadcast %cst_7 : f32 to vector<1x1x1xf32>
    %16 = arith.divf %14, %15 : vector<1x1x1xf32>
    %cst_8 = arith.constant 9.99999974E-6 : f32
    %17 = vector.broadcast %cst_8 : f32 to vector<1x1x1xf32>
    %18 = arith.addf %16, %17 : vector<1x1x1xf32>
    %19 = math.rsqrt %18 : vector<1x1x1xf32>
    %20 = vector.broadcast %19 : vector<1x1x1xf32> to vector<1x4x1xf32>
    %21 = arith.mulf %2, %20 : vector<1x4x1xf32>
    %22 = arith.mulf %11, %21 : vector<1x4x1xf32>
    %23 = arith.addf %22, %3 : vector<1x4x1xf32>
    %24 = math.tanh %23 : vector<1x4x1xf32>
    %cst_9 = arith.constant 1.000000e+00 : f32
    %25 = vector.broadcast %cst_9 : f32 to vector<1x4x1xf32>
    %26 = arith.addf %25, %24 : vector<1x4x1xf32>
    %c0_10 = arith.constant 0 : index
    %c0_11 = arith.constant 0 : index
    %c0_12 = arith.constant 0 : index
    %27 = vector.load %arg2[%c0_10, %c0_11, %c0_12] : memref<1x4x256xf32, #tpu.memory_space<vmem>>, vector<1x4x256xf32>
    %28 = vector.broadcast %26 : vector<1x4x1xf32> to vector<1x4x256xf32>
    %29 = arith.mulf %27, %28 : vector<1x4x256xf32>
    %c0_13 = arith.constant 0 : index
    %c0_14 = arith.constant 0 : index
    %c0_15 = arith.constant 0 : index
    %30 = vector.load %arg3[%c0_13, %c0_14, %c0_15] : memref<1x4x256xf32, #tpu.memory_space<vmem>>, vector<1x4x256xf32>
    tpu.vector_store %arg3[%c0_13, %c0_14, %c0_15], %29 {strides = array<i32>} : memref<1x4x256xf32, #tpu.memory_space<vmem>>, vector<1x4x256xf32>,
    return
  }
  func.func @transform_0(%arg0: i32) -> (i32, i32, i32) {
    %c0_i32 = arith.constant 0 : i32
    %c0_i32_0 = arith.constant 0 : i32
    %c0_i32_1 = arith.constant 0 : i32
    %c0_i32_2 = arith.constant 0 : i32
    return %c0_i32, %c0_i32_0, %c0_i32_1 : i32, i32, i32
  }
  func.func @transform_1(%arg0: i32) -> (i32, i32, i32) {
    %c0_i32 = arith.constant 0 : i32
    %c0_i32_0 = arith.constant 0 : i32
    %c0_i32_1 = arith.constant 0 : i32
    return %arg0, %c0_i32, %c0_i32_0 : i32, i32, i32
  }
  func.func @transform_2(%arg0: i32) -> (i32, i32, i32) {
    %c0_i32 = arith.constant 0 : i32
    %c0_i32_0 = arith.constant 0 : i32
    %c0_i32_1 = arith.constant 0 : i32
    return %arg0, %c0_i32, %c0_i32_0 : i32, i32, i32
  }
}

</mosaic_0001>

<llo_original>
// kernel: tpu_custom_call.1
$region0: #{tpu_custom_call.1}
  #allocation0 [shape = 'u32[]', space=smem, size = 0x4, offset = 0x4, fixed_abs, tag = 'smem constant byte address 0x4 - core index']
  #allocation1 [shape = 'u32[144,128]{1,0:T(1,128)}', space=vmem, size = 0x12000, scoped, tag = 'internal scratch']
  %s0 = inlined_call_operand.vmem [shape: f32[1,4,3], index: 0, kind: input, shape index: {}]
  %s1 = inlined_call_operand.hbm [shape: f32[2,4,256], index: 1, kind: input, shape index: {}]
  %s2 = inlined_call_operand.hbm [shape: f32[2,4,256], index: 2, kind: output, shape index: {}]
  %s3 = sld [smem:[#allocation0]]
  $region45: #{tpu_custom_call.1} parent=0
    _
  %s5 = ssub.s32 1, %s3
  %s6 = scalar_select 0, %s5, %s3
  $region1: #{tpu_custom_call.1} parent=0
    #allocation2 [shape = 'u8[8192]{0}', space=vmem, size = 0x2000, scoped, tag = 'input window, operand 1']
    #allocation3 [shape = 's32[2]{0}', space=sflag, size = 0x8, scoped, tag = 'scoped memory for tpu_custom_call.1']
    #allocation4 [shape = 's32[2]{0}', space=sflag, size = 0x8, scoped, tag = 'scoped memory for tpu_custom_call.1']
    #allocation5 [shape = 'u8[8192]{0}', space=vmem, size = 0x2000, scoped, tag = 'output window, operand 0']
    %7 = vsyncpa [#allocation3], 0
    %s8 = scalar_lea.sflag [#allocation3], 1
    %9 = vsyncpa %s8, 0
    %10 = vsyncpa [#allocation4], 0
    %s11 = scalar_lea.sflag [#allocation4], 1
    %12 = vsyncpa %s11, 0
    loop: start=0, step=1, limit=4
    $region2: #{tpu_custom_call.1} parent=1 // loop_pre_header
      _
    $region3: #{tpu_custom_call.1} parent=1 // loop_header
      %s14 = sphi 0, %s18
      %p15 = scmp.ge.s32.totalorder %s14, 4
      %s22 = sphi 0, %s22
      %s24 = sphi 0, %s22
      %s25 = sphi 0, %s24
      %s39 = sphi 0, %s25
      %s45 = sphi 0, %s47
      %s48 = sphi 0, %s45
      %s49 = sphi 0, %s48
      %s65 = sphi 0, %s49
      %s71 = sphi 0, %s73
      %s74 = sphi 0, %s71
      %s75 = sphi 0, %s74
      %s91 = sphi 0, %s75
    $region4: #{tpu_custom_call.1} parent=1 // loop_header_branch
      %17 = sbr.rel (%p15) target = $region8
    $region5: #{tpu_custom_call.1} parent=1 // loop_body
      %s19 = ssub.s32 %s14, 1
      %s20 = ssub.s32 %s14, 2
      %s21 = sadd.s32 %s14, 1
      %s23 = sadd.s32 %s22, 1
      %p26 = scmp.eq.s32.totalorder %s14, 1
      %p27 = scmp.ne.s32.totalorder %s22, %s24
      %p28 = scmp.eq.s32.totalorder %s14, 0
      %p29 = por %p27, %p28
      %p30 = scmp.ne.s32.totalorder %s22, %s24
      %p31 = scmp.eq.s32.totalorder %s19, 1
      %p32 = por %p30, %p31
      %p33 = scmp.ne.s32.totalorder %s24, %s25
      %p34 = scmp.eq.s32.totalorder %s19, 0
      %p35 = por %p33, %p34
      %p36 = scmp.ne.s32.totalorder %s24, %s25
      %p37 = scmp.eq.s32.totalorder %s20, 1
      %p38 = por %p36, %p37
      %p40 = scmp.ne.s32.totalorder %s25, %s39
      %p41 = scmp.eq.s32.totalorder %s20, 0
      %p42 = por %p40, %p41
      %s43 = ssub.s32 %s14, %s21
      %p44 = scmp.eq.s32.totalorder %s43, 0
      %s46 = sadd.s32 %s45, 1
      %s47 = scalar_select %p44, %s45, %s46
      %p50 = pneg %p44
      %p51 = scmp.eq.s32.totalorder %s14, 1
      %p52 = por %p50, %p51
      %p53 = scmp.ne.s32.totalorder %s45, %s48
      %p54 = scmp.eq.s32.totalorder %s14, 0
      %p55 = por %p53, %p54
      %p56 = scmp.ne.s32.totalorder %s45, %s48
      %p57 = scmp.eq.s32.totalorder %s19, 1
      %p58 = por %p56, %p57
      %p59 = scmp.ne.s32.totalorder %s48, %s49
      %p60 = scmp.eq.s32.totalorder %s19, 0
      %p61 = por %p59, %p60
      %p62 = scmp.ne.s32.totalorder %s48, %s49
      %p63 = scmp.eq.s32.totalorder %s20, 1
      %p64 = por %p62, %p63
      %p66 = scmp.ne.s32.totalorder %s49, %s65
      %p67 = scmp.eq.s32.totalorder %s20, 0
      %p68 = por %p66, %p67
      %s69 = ssub.s32 %s14, %s21
      %p70 = scmp.eq.s32.totalorder %s69, 0
      %s72 = sadd.s32 %s71, 1
      %s73 = scalar_select %p70, %s71, %s72
      %p76 = pneg %p70
      %p77 = scmp.eq.s32.totalorder %s14, 1
      %p78 = por %p76, %p77
      %p79 = scmp.ne.s32.totalorder %s71, %s74
      %p80 = scmp.eq.s32.totalorder %s14, 0
      %p81 = por %p79, %p80
      %p82 = scmp.ne.s32.totalorder %s71, %s74
      %p83 = scmp.eq.s32.totalorder %s19, 1
      %p84 = por %p82, %p83
      %p85 = scmp.ne.s32.totalorder %s74, %s75
      %p86 = scmp.eq.s32.totalorder %s19, 0
      %p87 = por %p85, %p86
      %p88 = scmp.ne.s32.totalorder %s74, %s75
      %p89 = scmp.eq.s32.totalorder %s20, 1
      %p90 = por %p88, %p89
      %p92 = scmp.ne.s32.totalorder %s75, %s91
      %p93 = scmp.eq.s32.totalorder %s20, 0
      %p94 = por %p92, %p93
      %p95 = scmp.le.s32.totalorder 1, %s14
      %p96 = scmp.lt.s32.totalorder %s14, 3
      %p97 = pnand %p95, %p96
      %p98 = pneg %p97
      // Predicated region
      $region9: #{tpu_custom_call.1} parent=5 // pred_check
        _
      $region10: #{tpu_custom_call.1} parent=5 // pred_check_branch
        %100 = sbr.rel (%p97) target = $region12
      $region11: #{tpu_custom_call.1} parent=5 // pred_region
        %s101 = ssub.s32 %s14, 1
        // Predicated region
        $region13: #{tpu_custom_call.1} parent=11 // pred_check
          %p102 = pneg %p35
        $region14: #{tpu_custom_call.1} parent=11 // pred_check_branch
          %104 = sbr.rel (%p102) target = $region16
        $region15: #{tpu_custom_call.1} parent=11 // pred_region
          _
        $region16: #{tpu_custom_call.1} parent=11 // pred_fallthru
          _
      $region12: #{tpu_custom_call.1} parent=5 // pred_fallthru
        _
      %p105 = scmp.lt.s32.totalorder %s14, 2
      // Predicated region
      $region17: #{tpu_custom_call.1} parent=5 // pred_check
        %p106 = pneg %p105
      $region18: #{tpu_custom_call.1} parent=5 // pred_check_branch
        %108 = sbr.rel (%p106) target = $region20
      $region19: #{tpu_custom_call.1} parent=5 // pred_region
        // Predicated region
        $region21: #{tpu_custom_call.1} parent=19 // pred_check
          %p109 = pneg %p55
        $region22: #{tpu_custom_call.1} parent=19 // pred_check_branch
          %111 = sbr.rel (%p109) target = $region24
        $region23: #{tpu_custom_call.1} parent=19 // pred_region
          %s112 = sand.u32 %s45, 1
          %s113 = scalar_lea.sflag [#allocation3], %s112
          %s114 = sand.u32 %s45, 1
          %s115 = smul.addr %s114, 8
          %s116 = scalar_lea.vmem [#allocation2], %s115
          %s118 = ssub.s32 128, 128
          %119 = vsyncadd %s113, %s118
          %s120 = smul.addr %s14, 2
          %s121 = smul.addr %s120, 64
          %s122 = scalar_lea.hbm %s1, %s121
          %s124 = sshll.u32 %s116, 4
          %s125 = int_to_ptr.vmem [resolvable:$true] %s124
          %127 = dma.hbm_to_vmem [thread:$0]  %s122, 128, %s125, %s113
        $region24: #{tpu_custom_call.1} parent=19 // pred_fallthru
          _
      $region20: #{tpu_custom_call.1} parent=5 // pred_fallthru
        _
      %p128 = scmp.le.s32.totalorder 1, %s14
      %p129 = scmp.lt.s32.totalorder %s14, 3
      %p130 = pnand %p128, %p129
      %p131 = pneg %p130
      // Predicated region
      $region25: #{tpu_custom_call.1} parent=5 // pred_check
        _
      $region26: #{tpu_custom_call.1} parent=5 // pred_check_branch
        %133 = sbr.rel (%p130) target = $region28
      $region27: #{tpu_custom_call.1} parent=5 // pred_region
        %s134 = ssub.s32 %s14, 1
        %s135 = sand.u32 %s48, 1
        %s136 = scalar_lea.sflag [#allocation3], %s135
        %s137 = sand.u32 %s48, 1
        %s138 = smul.addr %s137, 8
        %s139 = scalar_lea.vmem [#allocation2], %s138
        // Predicated region
        $region29: #{tpu_custom_call.1} parent=27 // pred_check
          %p140 = pneg %p61
        $region30: #{tpu_custom_call.1} parent=27 // pred_check_branch
          %142 = sbr.rel (%p140) target = $region32
        $region31: #{tpu_custom_call.1} parent=27 // pred_region
          %143 = dma.done %s136, 128
        $region32: #{tpu_custom_call.1} parent=27 // pred_fallthru
          _
        %p144 = pneg %p35
        %p145 = pneg %p32
        %s146 = sand.u32 %s48, 1
        %s147 = scalar_lea.sflag [#allocation3], %s146
        %s148 = sand.u32 %s48, 1
        %s149 = smul.addr %s148, 8
        %s150 = scalar_lea.vmem [#allocation2], %s149
        %p151 = pneg %p61
        %p152 = pneg %p58
        %p153 = pneg %p87
        %p154 = pneg %p84
        %s155 = sand.u32 %s74, 1
        %s156 = scalar_lea.sflag [#allocation4], %s155
        %s157 = sand.u32 %s74, 1
        %s158 = smul.addr %s157, 8
        %s159 = scalar_lea.vmem [#allocation5], %s158
        %v160 = vld [vmem:[%s0] sm:$0xf]
        %v161 = vld [vmem:[%s139] sm:$0xff]
        %v162 = vmul.f32 %v161, %v161
        %v164 = vcombine.high %v162, %v162
        %vm166 = vcmask 1043456
        %v167 = vsel %vm166, %v162, 0.0
        %v168 = vsel %vm166, %v164, 0.0
        %v169 = vadd.f32 %v167, %v168
        %170 = vadd.xlane.f32.xlu0 %v169
        %v171 = vpop.xlane.xlu0 %170
        %v172 = vadd.f32 %v171, 1e-05
        %v173 = vrsqrt.pop %v172
        %v174 = vmul.f32 %v172, %v173
        %vm175 = vcmp.eq.f32.partialorder %v172, inf
        %v176 = vsel %vm175, %v172, %v174
        %vm177 = vcmp.eq.f32.partialorder %v172, 0.0
        %v178 = vand.u32 %v172, 2147483648
        %v179 = vsel %vm177, %v178, %v176
        %v180 = vmul.f32 %v179, %v160
        %v181 = vmul.f32 %v180, %v180
        %vm182 = vcmask 3072
        %v183 = vsel %vm182, %v181, 0.0
        %v184 = vrot.slane %v183, 4
        %v185 = vadd.f32 %v183, %v184
        %v186 = vrot.slane %v185, 2
        %v187 = vadd.f32 %v185, %v186
        %v188 = vrot.slane %v187, 1
        %v189 = vadd.f32 %v187, %v188
        %v190 = vrcp.pop 4.0
        %v191 = vmul.f32 %v189, %v190
        %v192 = vadd.f32 %v191, 1e-05
        %v193 = vrsqrt.pop %v192
        %195 = vrot.lane.b32.xlu0 %v193, 1
        %v196 = vpop.permute.xlu0 %195
        %v198 = vmul.f32 %v160, %v196
        %200 = vrot.lane.b32.xlu0 %v198, 127
        %v201 = vpop.permute.xlu0 %200
        %v203 = vmul.f32 %v180, %v201
        %205 = vrot.lane.b32.xlu0 %v160, 126
        %v206 = vpop.permute.xlu0 %205
        %v208 = vadd.f32 %v203, %v206
        %v209 = vtanh.pop %v208
        %v210 = vadd.f32 %v209, 1.0
        %212 = vset.pattern.permute.xlu0 0
        %213 = vperm.xlu0 %212, %v210
        %v214 = vpop.permute.xlu0 %213
        %v216 = vunpack.c.l.s4 839922192
        %v217 = vunpack.c.0.s8 %v216
        %v218 = vlaneseq
        %v219 = vshrl.u32 %v218, 7
        %v220 = vsub.s32 %v217, %v219
        %v221 = vrot.slane %v214, %v220
        %v223 = vmul.f32 %v161, %v221
        %224 = vst [vmem:[%s159] sm:$0xff] %v223
        %s225 = sand.u32 %s74, 1
        %s226 = scalar_lea.sflag [#allocation4], %s225
        %s227 = sand.u32 %s74, 1
        %s228 = smul.addr %s227, 8
        %s229 = scalar_lea.vmem [#allocation5], %s228
        // Predicated region
        $region33: #{tpu_custom_call.1} parent=27 // pred_check
          %p230 = pneg %p84
        $region34: #{tpu_custom_call.1} parent=27 // pred_check_branch
          %232 = sbr.rel (%p230) target = $region36
        $region35: #{tpu_custom_call.1} parent=27 // pred_region
          %s234 = ssub.s32 128, 128
          %235 = vsyncadd %s226, %s234
          %s236 = smul.addr %s19, 2
          %s237 = smul.addr %s236, 64
          %s238 = scalar_lea.hbm %s2, %s237
          %s240 = sshll.u32 %s229, 4
          %s241 = int_to_ptr.vmem [resolvable:$true] %s240
          %243 = dma.vmem_to_hbm [thread:$0]  %s241, 128, %s238, %s226
        $region36: #{tpu_custom_call.1} parent=27 // pred_fallthru
          _
      $region28: #{tpu_custom_call.1} parent=5 // pred_fallthru
        _
      %p244 = scmp.le.s32.totalorder 2, %s14
      // Predicated region
      $region37: #{tpu_custom_call.1} parent=5 // pred_check
        %p245 = pneg %p244
      $region38: #{tpu_custom_call.1} parent=5 // pred_check_branch
        %247 = sbr.rel (%p245) target = $region40
      $region39: #{tpu_custom_call.1} parent=5 // pred_region
        %s248 = ssub.s32 %s14, 2
        // Predicated region
        $region41: #{tpu_custom_call.1} parent=39 // pred_check
          %p249 = pneg %p90
        $region42: #{tpu_custom_call.1} parent=39 // pred_check_branch
          %251 = sbr.rel (%p249) target = $region44
        $region43: #{tpu_custom_call.1} parent=39 // pred_region
          %s252 = sand.u32 %s75, 1
          %s253 = scalar_lea.sflag [#allocation4], %s252
          %s254 = sand.u32 %s75, 1
          %s255 = smul.addr %s254, 8
          %s256 = scalar_lea.vmem [#allocation5], %s255
          %257 = dma.done %s253, 128
        $region44: #{tpu_custom_call.1} parent=39 // pred_fallthru
          _
      $region40: #{tpu_custom_call.1} parent=5 // pred_fallthru
        _
    $region6: #{tpu_custom_call.1} parent=1 // loop_footer
      %s18 = sadd.s32 1, %s14
    $region7: #{tpu_custom_call.1} parent=1 // loop_footer_branch
      %13 = sbr.rel target = $region3
    $region8: #{tpu_custom_call.1} parent=1 // loop_exit
      _
    %258 = vsyncpa [#allocation3], 1
    %s259 = scalar_lea.sflag [#allocation3], 1
    %260 = vsyncpa %s259, 1
    %261 = vsyncpa [#allocation4], 1
    %s262 = scalar_lea.sflag [#allocation4], 1
    %263 = vsyncpa %s262, 1

</llo_original>
